<compile_context>
chip_gen: v7x
topology: tpu7x:2x2x1
jax: 0.10.0
libtpu: 0.0.40
codegen_flags: <defaults>
</compile_context>

<pallas_src>
import functools

import jax
import jax.numpy as jnp
from jax.experimental import pallas as pl
from jax.experimental.pallas import tpu as pltpu


def _round_up(x, m):
    return (x + m - 1) // m * m


def _logreg_kernel(x_ref, w_ref, b_ref, o_ref):
    # x_ref: (TM, F) VMEM      w_ref: (1, F) VMEM (resident across grid steps)
    # b_ref: (1,)    SMEM      o_ref: (1, TM) VMEM (lane-dense output row)
    x = x_ref[...]
    w = w_ref[...]
    # (1, F) . (TM, F), contracting F of both -> (1, TM): batch lands on lanes,
    # no in-kernel transpose of either operand; accumulate in f32 on the MXU.
    logits = jax.lax.dot_general(
        w, x,
        dimension_numbers=(((1,), (1,)), ((), ())),
        preferred_element_type=jnp.float32,
    )
    z = logits + b_ref[0]
    # sigmoid = 1 / (1 + exp(-z)); exp runs on the EUP (otherwise-idle slot).
    y = 1.0 / (1.0 + jnp.exp(-z))
    o_ref[...] = y.astype(o_ref.dtype)


@functools.partial(jax.jit, static_argnames=("block_rows",))
def logistic_regression(x, w, b, *, block_rows=512):
    """sigmoid(x @ w.T + b), matching nn.Linear(F, 1) + sigmoid.

    x: (B, F)  input batch (f32 or bf16 -- bf16 halves the HBM X stream)
    w: (1, F)  nn.Linear weight
    b: scalar / (1,) bias
    returns: (B, 1) in x.dtype
    """
    B, F = x.shape
    w = jnp.asarray(w, x.dtype).reshape(1, F)
    b = jnp.asarray(b, jnp.float32).reshape(1)

    # Batch tile size: multiple of 128 (keeps the lane-dense output block legal
    # and stores unmasked), as large as a conservative VMEM budget allows so we
    # sit near the HBM roofline, capped at block_rows.
    block_rows = max(128, (block_rows // 128) * 128)
    bytes_per_row = F * x.dtype.itemsize
    x_stream_budget = 32 * 1024 * 1024  # double-buffered X tile budget (v7x-safe)
    tm_from_vmem = max(128, (x_stream_budget // (2 * bytes_per_row)) // 128 * 128)
    tm = min(block_rows, tm_from_vmem, _round_up(B, 128))
    grid = (pl.cdiv(B, tm),)
    # TODO(synk): for very large F, add a K (feature) grid axis with an f32
    # accumulator in scratch so TM can stay >= 512 without blowing VMEM.

    out = pl.pallas_call(
        _logreg_kernel,
        out_shape=jax.ShapeDtypeStruct((1, B), x.dtype),
        grid=grid,
        in_specs=[
            pl.BlockSpec((tm, F), lambda i: (i, 0)),             # X: streamed tiles
            pl.BlockSpec((1, F), lambda i: (0, 0)),              # W: resident
            pl.BlockSpec(memory_space=pltpu.MemorySpace.SMEM),   # bias: SMEM scalar
        ],
        out_specs=pl.BlockSpec((1, tm), lambda i: (0, i)),       # lane-dense row
        compiler_params=pltpu.CompilerParams(
            dimension_semantics=("parallel",),                   # megacore on v7x
            vmem_limit_bytes=64 * 1024 * 1024,
        ),
    )(x, w, b)

    return out.reshape(B, 1)


if __name__ == "__main__":
    batch = 8
    input_features = 32

    key = jax.random.PRNGKey(0)
    kx, kw, kb = jax.random.split(key, 3)

    # Example input
    x = jax.random.normal(kx, (batch, input_features), dtype=jnp.float32)

    # Deterministic parameter init mirroring nn.Linear's default:
    # U(-1/sqrt(fan_in), 1/sqrt(fan_in))
    bound = 1.0 / float(input_features) ** 0.5
    w = jax.random.uniform(kw, (1, input_features), jnp.float32, -bound, bound)
    b = jax.random.uniform(kb, (1,), jnp.float32, -bound, bound)

    y = logistic_regression(x, w, b)
    jax.block_until_ready(y)

    # Pure-JAX reference check
    y_ref = jax.nn.sigmoid(x @ w.T + b.reshape(1, 1))
    assert y.shape == (batch, 1)
    assert jnp.allclose(y, y_ref, atol=1e-4, rtol=1e-4), float(
        jnp.max(jnp.abs(y - y_ref))
    )

    print("KERNEL_OK")
</pallas_src>

<mosaic_0001>
module attributes {stable_mosaic.version = 11 : i64} {
  func.func @_logreg_kernel(%arg0: i32, %arg1: memref<128x32xf32, #tpu.memory_space<vmem>>, %arg2: memref<1x32xf32, #tpu.memory_space<vmem>>, %arg3: memref<1xf32, #tpu.memory_space<smem>>, %arg4: memref<1x128xf32, #tpu.memory_space<vmem>>) attributes {dimension_semantics = [#tpu.dimension_semantics<parallel>], iteration_bounds = array<i64: 1>, scalar_prefetch = 0 : i64, scratch_operands = 0 : i64, tpu.core_type = #tpu.core_type<tc>, window_params = [{transform_indices = @transform_0, window_bounds = array<i64: 128, 32>}, {pipeline_mode = #tpu.pipeline_mode<synchronous>, transform_indices = @transform_1, window_bounds = array<i64: 1, 32>}, {transform_indices = @transform_2, window_bounds = array<i64: 1>}, {transform_indices = @transform_3, window_bounds = array<i64: 1, 128>}]} {
    %c0 = arith.constant 0 : index
    %c0_0 = arith.constant 0 : index
    %0 = vector.load %arg1[%c0, %c0_0] : memref<128x32xf32, #tpu.memory_space<vmem>>, vector<128x32xf32>
    %c0_1 = arith.constant 0 : index
    %c0_2 = arith.constant 0 : index
    %1 = vector.load %arg2[%c0_1, %c0_2] : memref<1x32xf32, #tpu.memory_space<vmem>>, vector<1x32xf32>
    %cst = arith.constant dense<0.000000e+00> : vector<1x128xf32>
    %2 = tpu.matmul %1, %0, %cst {dimension_numbers = #tpu.dot_dimension_numbers<[1], [1], [0], [0], [0, 0, 1, 0], [], []>} : vector<1x32xf32>, vector<128x32xf32>, vector<1x128xf32> -> vector<1x128xf32>
    %c0_3 = arith.constant 0 : index
    %3 = memref.load %arg3[%c0_3] : memref<1xf32, #tpu.memory_space<smem>>
    %4 = vector.broadcast %3 : f32 to vector<1x128xf32>
    %5 = arith.addf %2, %4 : vector<1x128xf32>
    %cst_4 = arith.constant 0.000000e+00 : f32
    %6 = vector.broadcast %cst_4 : f32 to vector<1x128xf32>
    %7 = arith.subf %6, %5 : vector<1x128xf32>
    %8 = math.exp %7 : vector<1x128xf32>
    %cst_5 = arith.constant 1.000000e+00 : f32
    %9 = vector.broadcast %cst_5 : f32 to vector<1x128xf32>
    %10 = arith.addf %9, %8 : vector<1x128xf32>
    %cst_6 = arith.constant 1.000000e+00 : f32
    %11 = vector.broadcast %cst_6 : f32 to vector<1x128xf32>
    %12 = arith.divf %11, %10 : vector<1x128xf32>
    %c0_7 = arith.constant 0 : index
    %c0_8 = arith.constant 0 : index
    %13 = vector.load %arg4[%c0_7, %c0_8] : memref<1x128xf32, #tpu.memory_space<vmem>>, vector<1x128xf32>
    tpu.vector_store %arg4[%c0_7, %c0_8], %12 {strides = array<i32>} : memref<1x128xf32, #tpu.memory_space<vmem>>, vector<1x128xf32>,
    return
  }
  func.func @transform_0(%arg0: i32) -> (i32, i32) {
    %c0_i32 = arith.constant 0 : i32
    %c0_i32_0 = arith.constant 0 : i32
    return %arg0, %c0_i32 : i32, i32
  }
  func.func @transform_1(%arg0: i32) -> (i32, i32) {
    %c0_i32 = arith.constant 0 : i32
    %c0_i32_0 = arith.constant 0 : i32
    %c0_i32_1 = arith.constant 0 : i32
    return %c0_i32, %c0_i32_0 : i32, i32
  }
  func.func @transform_2(%arg0: i32) -> i32 {
    %c0_i32 = arith.constant 0 : i32
    %c0_i32_0 = arith.constant 0 : i32
    return %c0_i32 : i32
  }
  func.func @transform_3(%arg0: i32) -> (i32, i32) {
    %c0_i32 = arith.constant 0 : i32
    %c0_i32_0 = arith.constant 0 : i32
    return %c0_i32, %arg0 : i32, i32
  }
}

</mosaic_0001>

<llo_original>
// kernel: logistic_regression.1
$region0: #{logistic_regression.1}
  #allocation0 [shape = 'u32[]', space=smem, size = 0x4, offset = 0x4, fixed_abs, tag = 'smem constant byte address 0x4 - core index']
  #allocation1 [shape = 'u32[144,128]{1,0:T(1,128)}', space=vmem, size = 0x12000, scoped, tag = 'internal scratch']
  #allocation2 [shape = 'f32[1]{0:T(128)S(6)}', space=smem, size = 0x200, scoped, tag = 'scoped memory for logistic_regression.1']
  %s0 = inlined_call_operand.hbm [shape: f32[8,32], index: 0, kind: input, shape index: {}]
  %s1 = inlined_call_operand.hbm [shape: f32[1,32], index: 1, kind: input, shape index: {}]
  %s2 = inlined_call_operand.<no memory space> [shape: f32[1], index: 2, kind: input, shape index: {}]
  %s3 = inlined_call_operand.hbm [shape: f32[1,8], index: 3, kind: output, shape index: {}]
  %s4 = sld [smem:[#allocation0]]
  $region30: #{logistic_regression.1} parent=0
    _
  %s6 = ssub.s32 1, %s4
  %s7 = scalar_select 0, %s6, %s4
  %8 = sst [smem:[#allocation2]] %s2
  $region1: #{logistic_regression.1} parent=0
    #allocation3 [shape = 'u8[65536]{0}', space=vmem, size = 0x10000, scoped, tag = 'input window, operand 0, single buffered']
    #allocation4 [shape = 's32[1]{0}', space=sflag, size = 0x4, scoped, tag = 'scoped memory for logistic_regression.1']
    #allocation5 [shape = 's32[1]{0}', space=sflag, size = 0x4, scoped, tag = 'scoped memory for logistic_regression.1']
    #allocation6 [shape = 'u8[512]{0}', space=vmem, size = 0x400, scoped, tag = 'input window, operand 1, single buffered']
    #allocation7 [shape = 's32[1]{0}', space=sflag, size = 0x4, scoped, tag = 'scoped memory for logistic_regression.1']
    #allocation8 [shape = 'u8[512]{0}', space=vmem, size = 0x400, scoped, tag = 'output window, operand 0, single buffered']
    %9 = vsyncpa [#allocation4], 0
    %10 = vsyncpa [#allocation7], 0
    %11 = vsyncpa [#allocation5], 0
    // Predicated region
    $region2: #{logistic_regression.1} parent=1 // pred_check
      _
    $region3: #{logistic_regression.1} parent=1 // pred_check_branch
      %13 = sbr.rel (0) target = $region5
    $region4: #{logistic_regression.1} parent=1 // pred_region
      %s15 = ssub.s32 2048, 128
      %16 = vsyncadd [#allocation4], %s15
      %s17 = sshll.u32 [#allocation3], 4
      %s18 = int_to_ptr.vmem [resolvable:$true] %s17
      %23 = dma.hbm_to_vmem [thread:$0]  %s0, 128, %s18, [#allocation4], 128, 128, 8
    $region5: #{logistic_regression.1} parent=1 // pred_fallthru
      _
    // Predicated region
    $region6: #{logistic_regression.1} parent=1 // pred_check
      _
    $region7: #{logistic_regression.1} parent=1 // pred_check_branch
      %25 = sbr.rel (0) target = $region9
    $region8: #{logistic_regression.1} parent=1 // pred_region
      %s27 = ssub.s32 16, 16
      %28 = vsyncadd [#allocation7], %s27
      %s30 = sshll.u32 [#allocation6], 4
      %s31 = int_to_ptr.vmem [resolvable:$true] %s30
      %33 = dma.hbm_to_vmem [thread:$0]  %s1, 16, %s31, [#allocation7]
    $region9: #{logistic_regression.1} parent=1 // pred_fallthru
      _
    // Predicated region
    $region10: #{logistic_regression.1} parent=1 // pred_check
      _
    $region11: #{logistic_regression.1} parent=1 // pred_check_branch
      %35 = sbr.rel (0) target = $region13
    $region12: #{logistic_regression.1} parent=1 // pred_region
      _
    $region13: #{logistic_regression.1} parent=1 // pred_fallthru
      _
    // Predicated region
    $region14: #{logistic_regression.1} parent=1 // pred_check
      _
    $region15: #{logistic_regression.1} parent=1 // pred_check_branch
      %37 = sbr.rel (0) target = $region17
    $region16: #{logistic_regression.1} parent=1 // pred_region
      %38 = dma.done [#allocation4], 2048
    $region17: #{logistic_regression.1} parent=1 // pred_fallthru
      _
    // Predicated region
    $region18: #{logistic_regression.1} parent=1 // pred_check
      _
    $region19: #{logistic_regression.1} parent=1 // pred_check_branch
      %40 = sbr.rel (0) target = $region21
    $region20: #{logistic_regression.1} parent=1 // pred_region
      %41 = dma.done [#allocation7], 16
    $region21: #{logistic_regression.1} parent=1 // pred_fallthru
      _
    %v42 = vld [vmem:[#allocation3] sm:$0xff]
    %v43 = vld [vmem:[#allocation3 + $0x8] sm:$0xff]
    %v44 = vld [vmem:[#allocation3 + $0x10] sm:$0xff]
    %v45 = vld [vmem:[#allocation3 + $0x18] sm:$0xff]
    %v46 = vld [vmem:[#allocation3 + $0x20] sm:$0xff]
    %v47 = vld [vmem:[#allocation3 + $0x28] sm:$0xff]
    %v48 = vld [vmem:[#allocation3 + $0x30] sm:$0xff]
    %v49 = vld [vmem:[#allocation3 + $0x38] sm:$0xff]
    %v50 = vld [vmem:[#allocation3 + $0x40] sm:$0xff]
    %v51 = vld [vmem:[#allocation3 + $0x48] sm:$0xff]
    %v52 = vld [vmem:[#allocation3 + $0x50] sm:$0xff]
    %v53 = vld [vmem:[#allocation3 + $0x58] sm:$0xff]
    %v54 = vld [vmem:[#allocation3 + $0x60] sm:$0xff]
    %v55 = vld [vmem:[#allocation3 + $0x68] sm:$0xff]
    %v56 = vld [vmem:[#allocation3 + $0x70] sm:$0xff]
    %v57 = vld [vmem:[#allocation3 + $0x78] sm:$0xff]
    %v58 = vld [vmem:[#allocation6] sm:$0x1]
    %s59 = sld [smem:[#allocation2]]
    %v60 = vstv %s59
    %vm61 = vcmask 261120
    %v63 = vsel %vm61, %v58, 0
    %v66 = vsel %vm61, %v42, 0
    %v69 = vsel %vm61, %v43, 0
    %v72 = vsel %vm61, %v44, 0
    %v75 = vsel %vm61, %v45, 0
    %v78 = vsel %vm61, %v46, 0
    %v81 = vsel %vm61, %v47, 0
    %v84 = vsel %vm61, %v48, 0
    %v87 = vsel %vm61, %v49, 0
    %v90 = vsel %vm61, %v50, 0
    %v93 = vsel %vm61, %v51, 0
    %v96 = vsel %vm61, %v52, 0
    %v99 = vsel %vm61, %v53, 0
    %v102 = vsel %vm61, %v54, 0
    %v105 = vsel %vm61, %v55, 0
    %v108 = vsel %vm61, %v56, 0
    %v111 = vsel %vm61, %v57, 0
    %113 = vmatprep.subr.mxu0 0.0
    %114 = vmatpush1.xpose.msra.mxu0 %v66
    %115 = vmatprep.subr.mxu0 0.0
    %116 = vmatpush1.xpose.msra.mxu0 %v69
    %117 = vmatprep.subr.mxu0 0.0
    %118 = vmatpush1.xpose.msra.mxu0 %v72
    %119 = vmatprep.subr.mxu0 0.0
    %120 = vmatpush1.xpose.msra.mxu0 %v75
    %121 = vmatprep.subr.mxu0 0.0
    %122 = vmatpush1.xpose.msra.mxu0 %v78
    %123 = vmatprep.subr.mxu0 0.0
    %124 = vmatpush1.xpose.msra.mxu0 %v81
    %125 = vmatprep.subr.mxu0 0.0
    %126 = vmatpush1.xpose.msra.mxu0 %v84
    %127 = vmatprep.subr.mxu0 0.0
    %128 = vmatpush1.xpose.msra.mxu0 %v87
    %129 = vmatprep.subr.mxu0 0.0
    %130 = vmatpush1.xpose.msra.mxu0 %v90
    %131 = vmatprep.subr.mxu0 0.0
    %132 = vmatpush1.xpose.msra.mxu0 %v93
    %133 = vmatprep.subr.mxu0 0.0
    %134 = vmatpush1.xpose.msra.mxu0 %v96
    %135 = vmatprep.subr.mxu0 0.0
    %136 = vmatpush1.xpose.msra.mxu0 %v99
    %137 = vmatprep.subr.mxu0 0.0
    %138 = vmatpush1.xpose.msra.mxu0 %v102
    %139 = vmatprep.subr.mxu0 0.0
    %140 = vmatpush1.xpose.msra.mxu0 %v105
    %141 = vmatprep.subr.mxu0 0.0
    %142 = vmatpush1.xpose.msra.mxu0 %v108
    %143 = vmatprep.subr.mxu0 0.0
    %144 = vmatpush1.xpose.msra.mxu0 %v111
    %145 = vmatprep.subr.mxu0 0.0
    %146 = vmatpush1.xpose.msra.mxu0 0.0
    %147 = vmatprep.subr.mxu0 0.0
    %148 = vmatpush1.xpose.msra.mxu0 0.0
    %149 = vmatprep.subr.mxu0 0.0
    %150 = vmatpush1.xpose.msra.mxu0 0.0
    %151 = vmatprep.subr.mxu0 0.0
    %152 = vmatpush1.xpose.msra.mxu0 0.0
    %153 = vmatprep.subr.mxu0 0.0
    %154 = vmatpush1.xpose.msra.mxu0 0.0
    %155 = vmatprep.subr.mxu0 0.0
    %156 = vmatpush1.xpose.msra.mxu0 0.0
    %157 = vmatprep.subr.mxu0 0.0
    %158 = vmatpush1.xpose.msra.mxu0 0.0
    %159 = vmatprep.subr.mxu0 0.0
    %160 = vmatpush1.xpose.msra.mxu0 0.0
    %161 = vmatprep.subr.mxu0 0.0
    %162 = vmatpush1.xpose.msra.mxu0 0.0
    %163 = vmatprep.subr.mxu0 0.0
    %164 = vmatpush1.xpose.msra.mxu0 0.0
    %165 = vmatprep.subr.mxu0 0.0
    %166 = vmatpush1.xpose.msra.mxu0 0.0
    %167 = vmatprep.subr.mxu0 0.0
    %168 = vmatpush1.xpose.msra.mxu0 0.0
    %169 = vmatprep.subr.mxu0 0.0
    %170 = vmatpush1.xpose.msra.mxu0 0.0
    %171 = vmatprep.subr.mxu0 0.0
    %172 = vmatpush1.xpose.msra.mxu0 0.0
    %173 = vmatprep.subr.mxu0 0.0
    %174 = vmatpush1.xpose.msra.mxu0 0.0
    %175 = vmatprep.subr.mxu0 0.0
    %176 = vmatpush1.xpose.msra.mxu0 0.0
    %177 = vmatprep.mubr.f32.mxu0 0.0
    %178 = vmatmul.mubr.f32.gmra.mrb[0].mxu0 %v63
    %v179 = vpop.f32.mrb[0].mxu0
    %v180 = vadd.f32 %v60, %v179
    %v181 = vpop.f32.mrb[0].mxu0
    %182 = vdwg.mxu0
    %v183 = vsub.f32 0.0, %v180
    %v184 = vmul.f32 %v183, 1.442695
    %v185 = vpow.pop %v184
    %v186 = vadd.f32 %v185, 1.0
    %v187 = vrcp.pop %v186
    %v188 = vmul.f32 1.0, %v187
    %189 = vst [vmem:[#allocation8] sm:$0x1] %v188
    // Predicated region
    $region22: #{logistic_regression.1} parent=1 // pred_check
      _
    $region23: #{logistic_regression.1} parent=1 // pred_check_branch
      %191 = sbr.rel (0) target = $region25
    $region24: #{logistic_regression.1} parent=1 // pred_region
      %s193 = ssub.s32 16, 16
      %194 = vsyncadd [#allocation5], %s193
      %s196 = sshll.u32 [#allocation8], 4
      %s197 = int_to_ptr.vmem [resolvable:$true] %s196
      %199 = dma.vmem_to_hbm [thread:$0]  %s197, 16, %s3, [#allocation5]
    $region25: #{logistic_regression.1} parent=1 // pred_fallthru
      _
    // Predicated region
    $region26: #{logistic_regression.1} parent=1 // pred_check
      _
    $region27: #{logistic_regression.1} parent=1 // pred_check_branch
      %201 = sbr.rel (0) target = $region29
    $region28: #{logistic_regression.1} parent=1 // pred_region
      %202 = dma.done [#allocation5], 16
    $region29: #{logistic_regression.1} parent=1 // pred_fallthru
      _
    %203 = vsyncpa [#allocation4], 1
    %204 = vsyncpa [#allocation7], 1
    %205 = vsyncpa [#allocation5], 1

</llo_original>
